<compile_context>
chip_gen: v7x
topology: tpu7x:2x2x1
jax: 0.10.0
libtpu: 0.0.40
codegen_flags: <defaults>
</compile_context>

<pallas_src>
import functools

import jax
import jax.numpy as jnp
from jax import lax
from jax.experimental import pallas as pl
from jax.experimental.pallas import tpu as pltpu


# ----------------------------------------------------------------------------
# Helpers / hardware-aware config
# ----------------------------------------------------------------------------
def _round_up(x, m):
    return ((x + m - 1) // m) * m


def _hw_config():
    """Returns (batch-tile row cap, vmem_limit_bytes, min grid steps)."""
    vmem_cap = 128 * 1024 * 1024
    try:
        vmem_cap = int(pltpu.get_tpu_info().vmem_capacity_bytes)
    except Exception:
        pass
    if vmem_cap <= 64 * 1024 * 1024:
        # v7x-class: 64 MiB VMEM per TensorCore, 2 TCs -> smaller tiles,
        # and at least 2 grid steps so the "parallel" axis uses both cores.
        return 4096, 40 * 1024 * 1024, 2
    # v5e / v6e: 128 MiB VMEM, single TensorCore -> bigger tiles, fewer steps.
    return 8192, 64 * 1024 * 1024, 1


_TILE_CAP, _VMEM_LIMIT, _MIN_STEPS = _hw_config()


def _pick_tile(batch, tile_cap, min_steps):
    """Balanced batch tile: multiple of 128 rows, capped, >=min_steps if big."""
    steps = pl.cdiv(batch, tile_cap)
    if batch > 256:
        steps = max(steps, min_steps)
    tb = _round_up(pl.cdiv(batch, steps), 128)
    return int(max(128, min(tb, _round_up(tile_cap, 128))))


# ----------------------------------------------------------------------------
# Kernels
# ----------------------------------------------------------------------------
def _dot_predict_kernel(s_ref, n_ref, o_ref):
    # sigmoid(sum(state_emb * next_emb, axis=-1)) for one batch tile,
    # emitted lane-dense as a (1, TB) row.
    prod = s_ref[...] * n_ref[...]                                   # [TB, D] VPU
    ones = jnp.ones((1, prod.shape[-1]), jnp.float32)
    # (1, TB) = ones(1,D) . prod(TB,D)^T  — minor-dim contraction (q@k.T form)
    logits = lax.dot_general(ones, prod, (((1,), (1,)), ((), ())),
                             preferred_element_type=jnp.float32)
    o_ref[...] = jax.nn.sigmoid(logits)                              # [1, TB]


def _make_mlp_kernel(num_hidden_layer):
    """MLP kernel for a given hidden-layer count (>= 1).

    Ref order: s, n, w1_s, w1_n, b1, (w_i, b_i)*, w_head[1,H], b_head(SMEM), out
    """
    def kernel(*refs):
        s_ref, n_ref = refs[0], refs[1]
        o_ref = refs[-1]
        wh_ref, bh_ref = refs[-3], refs[-2]

        # Layer 1: concat fused via split first-layer weight (no HBM concat).
        h = jnp.dot(s_ref[...], refs[2][...], preferred_element_type=jnp.float32)
        h = h + jnp.dot(n_ref[...], refs[3][...], preferred_element_type=jnp.float32)
        h = jnp.maximum(h + refs[4][...], 0.0)          # ReLU (Dropout = identity)

        idx = 5
        for _ in range(num_hidden_layer - 1):
            w_ref, b_ref = refs[idx], refs[idx + 1]
            idx += 2
            h = jnp.maximum(
                jnp.dot(h, w_ref[...], preferred_element_type=jnp.float32)
                + b_ref[...], 0.0)

        # Head, lane-dense: (1, TB) = wh(1,H) . h(TB,H)^T + b
        logits = lax.dot_general(wh_ref[...], h, (((1,), (1,)), ((), ())),
                                 preferred_element_type=jnp.float32)
        logits = logits + bh_ref[0, 0]
        o_ref[...] = jax.nn.sigmoid(logits)             # [1, TB]
    return kernel


# ----------------------------------------------------------------------------
# Wrappers
# ----------------------------------------------------------------------------
@functools.partial(jax.jit, static_argnames=("tile_cap",))
def predict_dot(state_emb, next_emb, *, tile_cap=_TILE_CAP):
    B, D = state_emb.shape
    TB = _pick_tile(B, tile_cap, _MIN_STEPS)
    T = pl.cdiv(B, TB)

    cost = pl.CostEstimate(flops=4 * B * D, transcendentals=B,
                           bytes_accessed=4 * (2 * B * D + B))

    out = pl.pallas_call(
        _dot_predict_kernel,
        out_shape=jax.ShapeDtypeStruct((1, T * TB), jnp.float32),
        grid=(T,),
        in_specs=[pl.BlockSpec((TB, D), lambda i: (i, 0)),
                  pl.BlockSpec((TB, D), lambda i: (i, 0))],
        out_specs=pl.BlockSpec((1, TB), lambda i: (0, i)),
        compiler_params=pltpu.CompilerParams(
            dimension_semantics=("parallel",),
            vmem_limit_bytes=_VMEM_LIMIT),
        cost_estimate=cost,
    )(state_emb, next_emb)
    # torch: prediction is [B]; squeeze(-1) on a [B] vector is a no-op.
    return out[0, :B]


@functools.partial(jax.jit, static_argnames=("num_hidden_layer", "tile_cap"))
def predict_mlp(state_emb, next_emb, params, *, num_hidden_layer,
                tile_cap=_TILE_CAP):
    B, ks_dim = state_emb.shape
    emb_dim = next_emb.shape[-1]
    TB = _pick_tile(B, tile_cap, _MIN_STEPS)
    T = pl.cdiv(B, TB)

    # Weights/biases (everything but the head bias) stay resident in VMEM:
    # same block index (0, 0) at every grid step -> no re-DMA.
    weight_specs = [pl.BlockSpec(p.shape, lambda i: (0, 0)) for p in params[:-1]]

    in_specs = [
        pl.BlockSpec((TB, ks_dim), lambda i: (i, 0)),       # state_emb tile
        pl.BlockSpec((TB, emb_dim), lambda i: (i, 0)),      # next_emb tile
        *weight_specs,
        pl.BlockSpec(memory_space=pltpu.MemorySpace.SMEM),  # head bias scalar
    ]

    dims = [ks_dim + emb_dim]
    for _ in range(num_hidden_layer):
        dims.append(dims[-1] // 2)
    mm_flops = 2 * B * (sum(a * b for a, b in zip(dims[:-1], dims[1:])) + dims[-1])
    param_elems = sum(int(p.size) for p in params)
    cost = pl.CostEstimate(
        flops=mm_flops, transcendentals=B,
        bytes_accessed=4 * (B * (ks_dim + emb_dim) + B + param_elems))

    out = pl.pallas_call(
        _make_mlp_kernel(num_hidden_layer),
        out_shape=jax.ShapeDtypeStruct((1, T * TB), jnp.float32),
        grid=(T,),
        in_specs=in_specs,
        out_specs=pl.BlockSpec((1, TB), lambda i: (0, i)),
        compiler_params=pltpu.CompilerParams(
            dimension_semantics=("parallel",),
            vmem_limit_bytes=_VMEM_LIMIT),
        cost_estimate=cost,
    )(state_emb, next_emb, *params)
    # torch: prediction is [B, 1]; squeeze(-1) -> [B]
    return out[0, :B]


# ----------------------------------------------------------------------------
# Parameter construction (matches Predict('mlp', ...) layer shapes)
# ----------------------------------------------------------------------------
def make_mlp_params(key, ks_dim, emb_dim, num_hidden_layer):
    """Deterministic init matching Predict('mlp', ...).

    PyTorch Linear(in, out) stores weight [out, in]; we store [in, out] so the
    kernel computes x @ W + b. The first-layer weight is split into state/next
    halves (fuses the torch.cat); the head weight is stored as [1, H_last].
    """
    assert num_hidden_layer >= 1
    sizes = []
    input_size = ks_dim + emb_dim
    for _ in range(num_hidden_layer):
        sizes.append((input_size, input_size // 2))
        input_size //= 2
    sizes.append((input_size, 1))          # output head

    keys = jax.random.split(key, len(sizes))
    params = []
    for li, (k, (fan_in, fan_out)) in enumerate(zip(keys, sizes)):
        kw, kb = jax.random.split(k)
        bound = 1.0 / jnp.sqrt(fan_in)
        w = jax.random.uniform(kw, (fan_in, fan_out), jnp.float32, -bound, bound)
        b = jax.random.uniform(kb, (1, fan_out), jnp.float32, -bound, bound)
        if li == 0:
            params.extend([w[:ks_dim], w[ks_dim:], b])   # split first layer
        elif li == len(sizes) - 1:
            params.extend([w.T, b])                      # head stored [1, H]
        else:
            params.extend([w, b])
    return tuple(params)


# ----------------------------------------------------------------------------
# Plain-JAX references
# ----------------------------------------------------------------------------
def ref_dot(state_emb, next_emb):
    return jax.nn.sigmoid(jnp.sum(state_emb * next_emb, axis=-1))


def ref_mlp(state_emb, next_emb, params, num_hidden_layer):
    w1s, w1n, b1 = params[0], params[1], params[2]
    h = jnp.maximum(state_emb @ w1s + next_emb @ w1n + b1, 0.0)
    idx = 3
    for _ in range(num_hidden_layer - 1):
        w, b = params[idx], params[idx + 1]
        idx += 2
        h = jnp.maximum(h @ w + b, 0.0)
    wh, bh = params[-2], params[-1]
    return jax.nn.sigmoid(jnp.sum(h * wh, axis=-1) + bh[0, 0])


# ----------------------------------------------------------------------------
if __name__ == "__main__":
    ks_dim = 32
    emb_dim = 32
    num_hidden_layer = 2

    key = jax.random.PRNGKey(0)
    k_s, k_n, k_p, k_s2, k_n2 = jax.random.split(key, 5)
    params = make_mlp_params(k_p, ks_dim, emb_dim, num_hidden_layer)

    # --- small batch (single partial tile, no padding pass) ---
    B = 8
    state_emb = jax.random.normal(k_s, (B, ks_dim), jnp.float32)
    next_emb = jax.random.normal(k_n, (B, emb_dim), jnp.float32)

    y_dot = predict_dot(state_emb, next_emb)
    jax.block_until_ready(y_dot)
    assert y_dot.shape == (B,)
    assert jnp.allclose(y_dot, ref_dot(state_emb, next_emb), atol=1e-4, rtol=1e-4)

    y_mlp = predict_mlp(state_emb, next_emb, params,
                        num_hidden_layer=num_hidden_layer)
    jax.block_until_ready(y_mlp)
    assert y_mlp.shape == (B,)
    assert jnp.allclose(y_mlp, ref_mlp(state_emb, next_emb, params,
                                       num_hidden_layer),
                        atol=1e-4, rtol=1e-4)

    # --- larger batch (multiple grid steps + partial last block path) ---
    B2 = 200
    state_emb2 = jax.random.normal(k_s2, (B2, ks_dim), jnp.float32)
    next_emb2 = jax.random.normal(k_n2, (B2, emb_dim), jnp.float32)

    y_dot2 = predict_dot(state_emb2, next_emb2, tile_cap=128)
    jax.block_until_ready(y_dot2)
    assert y_dot2.shape == (B2,)
    assert jnp.allclose(y_dot2, ref_dot(state_emb2, next_emb2),
                        atol=1e-4, rtol=1e-4)

    y_mlp2 = predict_mlp(state_emb2, next_emb2, params,
                         num_hidden_layer=num_hidden_layer, tile_cap=128)
    jax.block_until_ready(y_mlp2)
    assert y_mlp2.shape == (B2,)
    assert jnp.allclose(y_mlp2, ref_mlp(state_emb2, next_emb2, params,
                                        num_hidden_layer),
                        atol=1e-4, rtol=1e-4)

    print("KERNEL_OK")
</pallas_src>

<mosaic_0001>
module attributes {stable_mosaic.version = 11 : i64} {
  func.func @_dot_predict_kernel(%arg0: i32, %arg1: memref<128x32xf32, #tpu.memory_space<vmem>>, %arg2: memref<128x32xf32, #tpu.memory_space<vmem>>, %arg3: memref<1x128xf32, #tpu.memory_space<vmem>>) attributes {dimension_semantics = [#tpu.dimension_semantics<parallel>], iteration_bounds = array<i64: 1>, scalar_prefetch = 0 : i64, scratch_operands = 0 : i64, tpu.core_type = #tpu.core_type<tc>, window_params = [{transform_indices = @transform_0, window_bounds = array<i64: 128, 32>}, {transform_indices = @transform_1, window_bounds = array<i64: 128, 32>}, {transform_indices = @transform_2, window_bounds = array<i64: 1, 128>}]} {
    %c0 = arith.constant 0 : index
    %c0_0 = arith.constant 0 : index
    %0 = vector.load %arg1[%c0, %c0_0] : memref<128x32xf32, #tpu.memory_space<vmem>>, vector<128x32xf32>
    %c0_1 = arith.constant 0 : index
    %c0_2 = arith.constant 0 : index
    %1 = vector.load %arg2[%c0_1, %c0_2] : memref<128x32xf32, #tpu.memory_space<vmem>>, vector<128x32xf32>
    %2 = arith.mulf %0, %1 : vector<128x32xf32>
    %cst = arith.constant 1.000000e+00 : f32
    %3 = vector.broadcast %cst : f32 to vector<1x32xf32>
    %cst_3 = arith.constant dense<0.000000e+00> : vector<1x128xf32>
    %4 = tpu.matmul %3, %2, %cst_3 {dimension_numbers = #tpu.dot_dimension_numbers<[1], [1], [0], [0], [0, 0, 1, 0], [], []>} : vector<1x32xf32>, vector<128x32xf32>, vector<1x128xf32> -> vector<1x128xf32>
    %5 = arith.negf %4 : vector<1x128xf32>
    %6 = math.exp %5 : vector<1x128xf32>
    %cst_4 = arith.constant 1.000000e+00 : f32
    %7 = vector.broadcast %cst_4 : f32 to vector<1x128xf32>
    %8 = arith.addf %7, %6 : vector<1x128xf32>
    %9 = arith.divf %7, %8 : vector<1x128xf32>
    %c0_5 = arith.constant 0 : index
    %c0_6 = arith.constant 0 : index
    %10 = vector.load %arg3[%c0_5, %c0_6] : memref<1x128xf32, #tpu.memory_space<vmem>>, vector<1x128xf32>
    tpu.vector_store %arg3[%c0_5, %c0_6], %9 {strides = array<i32>} : memref<1x128xf32, #tpu.memory_space<vmem>>, vector<1x128xf32>,
    return
  }
  func.func @transform_0(%arg0: i32) -> (i32, i32) {
    %c0_i32 = arith.constant 0 : i32
    %c0_i32_0 = arith.constant 0 : i32
    return %arg0, %c0_i32 : i32, i32
  }
  func.func @transform_1(%arg0: i32) -> (i32, i32) {
    %c0_i32 = arith.constant 0 : i32
    %c0_i32_0 = arith.constant 0 : i32
    return %arg0, %c0_i32 : i32, i32
  }
  func.func @transform_2(%arg0: i32) -> (i32, i32) {
    %c0_i32 = arith.constant 0 : i32
    %c0_i32_0 = arith.constant 0 : i32
    return %c0_i32, %arg0 : i32, i32
  }
}

</mosaic_0001>

<llo_original>
// kernel: predict_dot.1
$region0: #{predict_dot.1}
  #allocation0 [shape = 'u32[]', space=smem, size = 0x4, offset = 0x4, fixed_abs, tag = 'smem constant byte address 0x4 - core index']
  #allocation1 [shape = 'u32[144,128]{1,0:T(1,128)}', space=vmem, size = 0x12000, scoped, tag = 'internal scratch']
  %s0 = inlined_call_operand.hbm [shape: f32[8,32], index: 0, kind: input, shape index: {}]
  %s1 = inlined_call_operand.hbm [shape: f32[8,32], index: 1, kind: input, shape index: {}]
  %s2 = inlined_call_operand.hbm [shape: f32[1,128], index: 2, kind: output, shape index: {}]
  %s3 = sld [smem:[#allocation0]]
  $region26: #{predict_dot.1} parent=0
    _
  %s5 = ssub.s32 1, %s3
  %s6 = scalar_select 0, %s5, %s3
  $region1: #{predict_dot.1} parent=0
    #allocation2 [shape = 'u8[65536]{0}', space=vmem, size = 0x10000, scoped, tag = 'input window, operand 0, single buffered']
    #allocation3 [shape = 's32[1]{0}', space=sflag, size = 0x4, scoped, tag = 'scoped memory for predict_dot.1']
    #allocation4 [shape = 's32[1]{0}', space=sflag, size = 0x4, scoped, tag = 'scoped memory for predict_dot.1']
    #allocation5 [shape = 'u8[65536]{0}', space=vmem, size = 0x10000, scoped, tag = 'input window, operand 1, single buffered']
    #allocation6 [shape = 's32[1]{0}', space=sflag, size = 0x4, scoped, tag = 'scoped memory for predict_dot.1']
    #allocation7 [shape = 'u8[512]{0}', space=vmem, size = 0x400, scoped, tag = 'output window, operand 0, single buffered']
    %7 = vsyncpa [#allocation3], 0
    %8 = vsyncpa [#allocation6], 0
    %9 = vsyncpa [#allocation4], 0
    // Predicated region
    $region2: #{predict_dot.1} parent=1 // pred_check
      _
    $region3: #{predict_dot.1} parent=1 // pred_check_branch
      %11 = sbr.rel (0) target = $region5
    $region4: #{predict_dot.1} parent=1 // pred_region
      %s13 = ssub.s32 2048, 128
      %14 = vsyncadd [#allocation3], %s13
      %s15 = sshll.u32 [#allocation2], 4
      %s16 = int_to_ptr.vmem [resolvable:$true] %s15
      %21 = dma.hbm_to_vmem [thread:$0]  %s0, 128, %s16, [#allocation3], 128, 128, 8
    $region5: #{predict_dot.1} parent=1 // pred_fallthru
      _
    // Predicated region
    $region6: #{predict_dot.1} parent=1 // pred_check
      _
    $region7: #{predict_dot.1} parent=1 // pred_check_branch
      %23 = sbr.rel (0) target = $region9
    $region8: #{predict_dot.1} parent=1 // pred_region
      %s25 = ssub.s32 2048, 128
      %26 = vsyncadd [#allocation6], %s25
      %s27 = sshll.u32 [#allocation5], 4
      %s28 = int_to_ptr.vmem [resolvable:$true] %s27
      %33 = dma.hbm_to_vmem [thread:$0]  %s1, 128, %s28, [#allocation6], 128, 128, 8
    $region9: #{predict_dot.1} parent=1 // pred_fallthru
      _
    // Predicated region
    $region10: #{predict_dot.1} parent=1 // pred_check
      _
    $region11: #{predict_dot.1} parent=1 // pred_check_branch
      %35 = sbr.rel (0) target = $region13
    $region12: #{predict_dot.1} parent=1 // pred_region
      %36 = dma.done [#allocation3], 2048
    $region13: #{predict_dot.1} parent=1 // pred_fallthru
      _
    // Predicated region
    $region14: #{predict_dot.1} parent=1 // pred_check
      _
    $region15: #{predict_dot.1} parent=1 // pred_check_branch
      %38 = sbr.rel (0) target = $region17
    $region16: #{predict_dot.1} parent=1 // pred_region
      %39 = dma.done [#allocation6], 2048
    $region17: #{predict_dot.1} parent=1 // pred_fallthru
      _
    %v40 = vld [vmem:[#allocation2] sm:$0xff]
    %v41 = vld [vmem:[#allocation2 + $0x8] sm:$0xff]
    %v42 = vld [vmem:[#allocation2 + $0x10] sm:$0xff]
    %v43 = vld [vmem:[#allocation2 + $0x18] sm:$0xff]
    %v44 = vld [vmem:[#allocation2 + $0x20] sm:$0xff]
    %v45 = vld [vmem:[#allocation2 + $0x28] sm:$0xff]
    %v46 = vld [vmem:[#allocation2 + $0x30] sm:$0xff]
    %v47 = vld [vmem:[#allocation2 + $0x38] sm:$0xff]
    %v48 = vld [vmem:[#allocation2 + $0x40] sm:$0xff]
    %v49 = vld [vmem:[#allocation2 + $0x48] sm:$0xff]
    %v50 = vld [vmem:[#allocation2 + $0x50] sm:$0xff]
    %v51 = vld [vmem:[#allocation2 + $0x58] sm:$0xff]
    %v52 = vld [vmem:[#allocation2 + $0x60] sm:$0xff]
    %v53 = vld [vmem:[#allocation2 + $0x68] sm:$0xff]
    %v54 = vld [vmem:[#allocation2 + $0x70] sm:$0xff]
    %v55 = vld [vmem:[#allocation2 + $0x78] sm:$0xff]
    %v56 = vld [vmem:[#allocation5] sm:$0xff]
    %v57 = vld [vmem:[#allocation5 + $0x8] sm:$0xff]
    %v58 = vld [vmem:[#allocation5 + $0x10] sm:$0xff]
    %v59 = vld [vmem:[#allocation5 + $0x18] sm:$0xff]
    %v60 = vld [vmem:[#allocation5 + $0x20] sm:$0xff]
    %v61 = vld [vmem:[#allocation5 + $0x28] sm:$0xff]
    %v62 = vld [vmem:[#allocation5 + $0x30] sm:$0xff]
    %v63 = vld [vmem:[#allocation5 + $0x38] sm:$0xff]
    %v64 = vld [vmem:[#allocation5 + $0x40] sm:$0xff]
    %v65 = vld [vmem:[#allocation5 + $0x48] sm:$0xff]
    %v66 = vld [vmem:[#allocation5 + $0x50] sm:$0xff]
    %v67 = vld [vmem:[#allocation5 + $0x58] sm:$0xff]
    %v68 = vld [vmem:[#allocation5 + $0x60] sm:$0xff]
    %v69 = vld [vmem:[#allocation5 + $0x68] sm:$0xff]
    %v70 = vld [vmem:[#allocation5 + $0x70] sm:$0xff]
    %v71 = vld [vmem:[#allocation5 + $0x78] sm:$0xff]
    %v72 = vmul.f32 %v40, %v56
    %v73 = vmul.f32 %v41, %v57
    %v74 = vmul.f32 %v42, %v58
    %v75 = vmul.f32 %v43, %v59
    %v76 = vmul.f32 %v44, %v60
    %v77 = vmul.f32 %v45, %v61
    %v78 = vmul.f32 %v46, %v62
    %v79 = vmul.f32 %v47, %v63
    %v80 = vmul.f32 %v48, %v64
    %v81 = vmul.f32 %v49, %v65
    %v82 = vmul.f32 %v50, %v66
    %v83 = vmul.f32 %v51, %v67
    %v84 = vmul.f32 %v52, %v68
    %v85 = vmul.f32 %v53, %v69
    %v86 = vmul.f32 %v54, %v70
    %v87 = vmul.f32 %v55, %v71
    %vm88 = vcmask 261120
    %v90 = vsel %vm88, 1.0, 0
    %v93 = vsel %vm88, %v72, 0
    %v96 = vsel %vm88, %v73, 0
    %v99 = vsel %vm88, %v74, 0
    %v102 = vsel %vm88, %v75, 0
    %v105 = vsel %vm88, %v76, 0
    %v108 = vsel %vm88, %v77, 0
    %v111 = vsel %vm88, %v78, 0
    %v114 = vsel %vm88, %v79, 0
    %v117 = vsel %vm88, %v80, 0
    %v120 = vsel %vm88, %v81, 0
    %v123 = vsel %vm88, %v82, 0
    %v126 = vsel %vm88, %v83, 0
    %v129 = vsel %vm88, %v84, 0
    %v132 = vsel %vm88, %v85, 0
    %v135 = vsel %vm88, %v86, 0
    %v138 = vsel %vm88, %v87, 0
    %140 = vmatprep.subr.mxu0 0.0
    %141 = vmatpush1.xpose.msra.mxu0 %v93
    %142 = vmatprep.subr.mxu0 0.0
    %143 = vmatpush1.xpose.msra.mxu0 %v96
    %144 = vmatprep.subr.mxu0 0.0
    %145 = vmatpush1.xpose.msra.mxu0 %v99
    %146 = vmatprep.subr.mxu0 0.0
    %147 = vmatpush1.xpose.msra.mxu0 %v102
    %148 = vmatprep.subr.mxu0 0.0
    %149 = vmatpush1.xpose.msra.mxu0 %v105
    %150 = vmatprep.subr.mxu0 0.0
    %151 = vmatpush1.xpose.msra.mxu0 %v108
    %152 = vmatprep.subr.mxu0 0.0
    %153 = vmatpush1.xpose.msra.mxu0 %v111
    %154 = vmatprep.subr.mxu0 0.0
    %155 = vmatpush1.xpose.msra.mxu0 %v114
    %156 = vmatprep.subr.mxu0 0.0
    %157 = vmatpush1.xpose.msra.mxu0 %v117
    %158 = vmatprep.subr.mxu0 0.0
    %159 = vmatpush1.xpose.msra.mxu0 %v120
    %160 = vmatprep.subr.mxu0 0.0
    %161 = vmatpush1.xpose.msra.mxu0 %v123
    %162 = vmatprep.subr.mxu0 0.0
    %163 = vmatpush1.xpose.msra.mxu0 %v126
    %164 = vmatprep.subr.mxu0 0.0
    %165 = vmatpush1.xpose.msra.mxu0 %v129
    %166 = vmatprep.subr.mxu0 0.0
    %167 = vmatpush1.xpose.msra.mxu0 %v132
    %168 = vmatprep.subr.mxu0 0.0
    %169 = vmatpush1.xpose.msra.mxu0 %v135
    %170 = vmatprep.subr.mxu0 0.0
    %171 = vmatpush1.xpose.msra.mxu0 %v138
    %172 = vmatprep.subr.mxu0 0.0
    %173 = vmatpush1.xpose.msra.mxu0 0.0
    %174 = vmatprep.subr.mxu0 0.0
    %175 = vmatpush1.xpose.msra.mxu0 0.0
    %176 = vmatprep.subr.mxu0 0.0
    %177 = vmatpush1.xpose.msra.mxu0 0.0
    %178 = vmatprep.subr.mxu0 0.0
    %179 = vmatpush1.xpose.msra.mxu0 0.0
    %180 = vmatprep.subr.mxu0 0.0
    %181 = vmatpush1.xpose.msra.mxu0 0.0
    %182 = vmatprep.subr.mxu0 0.0
    %183 = vmatpush1.xpose.msra.mxu0 0.0
    %184 = vmatprep.subr.mxu0 0.0
    %185 = vmatpush1.xpose.msra.mxu0 0.0
    %186 = vmatprep.subr.mxu0 0.0
    %187 = vmatpush1.xpose.msra.mxu0 0.0
    %188 = vmatprep.subr.mxu0 0.0
    %189 = vmatpush1.xpose.msra.mxu0 0.0
    %190 = vmatprep.subr.mxu0 0.0
    %191 = vmatpush1.xpose.msra.mxu0 0.0
    %192 = vmatprep.subr.mxu0 0.0
    %193 = vmatpush1.xpose.msra.mxu0 0.0
    %194 = vmatprep.subr.mxu0 0.0
    %195 = vmatpush1.xpose.msra.mxu0 0.0
    %196 = vmatprep.subr.mxu0 0.0
    %197 = vmatpush1.xpose.msra.mxu0 0.0
    %198 = vmatprep.subr.mxu0 0.0
    %199 = vmatpush1.xpose.msra.mxu0 0.0
    %200 = vmatprep.subr.mxu0 0.0
    %201 = vmatpush1.xpose.msra.mxu0 0.0
    %202 = vmatprep.subr.mxu0 0.0
    %203 = vmatpush1.xpose.msra.mxu0 0.0
    %204 = vmatprep.mubr.f32.mxu0 0.0
    %205 = vmatmul.mubr.f32.gmra.mrb[0].mxu0 %v90
    %v206 = vpop.f32.mrb[0].mxu0
    %v207 = vadd.f32 0.0, %v206
    %v208 = vpop.f32.mrb[0].mxu0
    %209 = vdwg.mxu0
    %v210 = vxor.u32 %v207, 2147483648
    %v211 = vmul.f32 %v210, 1.442695
    %v212 = vpow.pop %v211
    %v213 = vadd.f32 %v212, 1.0
    %v214 = vrcp.pop %v213
    %v215 = vmul.f32 1.0, %v214
    %216 = vst [vmem:[#allocation7] sm:$0x1] %v215
    // Predicated region
    $region18: #{predict_dot.1} parent=1 // pred_check
      _
    $region19: #{predict_dot.1} parent=1 // pred_check_branch
      %218 = sbr.rel (0) target = $region21
    $region20: #{predict_dot.1} parent=1 // pred_region
      %s220 = ssub.s32 16, 16
      %221 = vsyncadd [#allocation4], %s220
      %s223 = sshll.u32 [#allocation7], 4
      %s224 = int_to_ptr.vmem [resolvable:$true] %s223
      %226 = dma.vmem_to_hbm [thread:$0]  %s224, 16, %s2, [#allocation4]
    $region21: #{predict_dot.1} parent=1 // pred_fallthru
      _
    // Predicated region
    $region22: #{predict_dot.1} parent=1 // pred_check
      _
    $region23: #{predict_dot.1} parent=1 // pred_check_branch
      %228 = sbr.rel (0) target = $region25
    $region24: #{predict_dot.1} parent=1 // pred_region
      %229 = dma.done [#allocation4], 16
    $region25: #{predict_dot.1} parent=1 // pred_fallthru
      _
    %230 = vsyncpa [#allocation3], 1
    %231 = vsyncpa [#allocation6], 1
    %232 = vsyncpa [#allocation4], 1

</llo_original>
